<compile_context>
chip_gen: v5e
topology: v5e:2x2
jax: 0.10.0
libtpu: 0.0.40
codegen_flags: <defaults>
</compile_context>

<pallas_src>
import jax
import jax.numpy as jnp
from jax.experimental import pallas as pl
from jax.experimental.pallas import tpu as pltpu


def rnn_kernel(x_ref, w_ref, bh_ref, why_ref, by_ref, y_ref):
    """Whole RNN forward in one invocation.

    x_ref   : (B, T, D) f32   — input sequence, batch-major (no transpose).
    w_ref   : (D+H, H) bf16   — stacked [Wxh; Whh] (stacked once in wrapper).
    bh_ref  : (1, H)   f32
    why_ref : (H, O)   bf16
    by_ref  : (1, O)   f32
    y_ref   : (B, O)   f32
    """
    B, T, _ = x_ref.shape
    H = w_ref.shape[1]
    O = why_ref.shape[1]

    # Hoist resident loads / bias broadcasts out of the time loop.
    w = w_ref[...]                                     # (D+H, H) bf16
    bh = jnp.broadcast_to(bh_ref[...], (B, H))         # (B, H)   f32
    by = jnp.broadcast_to(by_ref[...], (B, O))         # (B, O)   f32

    h = jnp.zeros((B, H), jnp.float32)                 # hidden state in vregs

    # Static Python loop == fully unrolled in-kernel recurrence (T is static).
    for t in range(T):
        x_t = x_ref[:, t, :]                           # (B, D) f32, static slice
        z = jnp.concatenate([x_t, h], axis=-1)         # (B, D+H) f32
        # Single fused MXU push per step, bf16 in / f32 accumulate.
        pre = jnp.dot(z.astype(jnp.bfloat16), w,
                      preferred_element_type=jnp.float32) + bh
        h = jnp.tanh(pre)                              # f32 on VPU/EUP

    y = jnp.dot(h.astype(jnp.bfloat16), why_ref[...],
                preferred_element_type=jnp.float32) + by
    y_ref[...] = y.astype(y_ref.dtype)


@jax.jit
def vanilla_rnn_forward(x, Wxh, Whh, bh, Why, by):
    """x: (B, T, D) float32. Returns y: (B, O) float32."""
    B, T, D = x.shape
    H = Wxh.shape[1]
    O = Why.shape[1]

    # Pad batch up to the f32 sublane tile (8) so MXU rows are filled.
    B_pad = max(8, ((B + 7) // 8) * 8)
    x_p = x if B_pad == B else jnp.pad(x, ((0, B_pad - B), (0, 0), (0, 0)))

    # Stack recurrent weights once (wrapper-side, not per step); bf16 operands.
    w_cat = jnp.concatenate([Wxh, Whh], axis=0).astype(jnp.bfloat16)  # (D+H, H)
    why_b = Why.astype(jnp.bfloat16)                                  # (H, O)
    bh_2d = bh.reshape(1, H).astype(jnp.float32)
    by_2d = by.reshape(1, O).astype(jnp.float32)

    y_pad = pl.pallas_call(
        rnn_kernel,
        out_shape=jax.ShapeDtypeStruct((B_pad, O), jnp.float32),
        grid=(1,),  # single invocation; whole recurrence lives in-kernel
        in_specs=[
            pl.BlockSpec((B_pad, T, D), lambda i: (0, 0, 0)),  # x (as given)
            pl.BlockSpec((D + H, H), lambda i: (0, 0)),        # [Wxh; Whh]
            pl.BlockSpec((1, H), lambda i: (0, 0)),            # bh
            pl.BlockSpec((H, O), lambda i: (0, 0)),            # Why
            pl.BlockSpec((1, O), lambda i: (0, 0)),            # by
        ],
        out_specs=pl.BlockSpec((B_pad, O), lambda i: (0, 0)),
        compiler_params=pltpu.CompilerParams(
            dimension_semantics=("arbitrary",)),
    )(x_p, w_cat, bh_2d, why_b, by_2d)

    return y_pad[:B]


def reference_rnn(x, Wxh, Whh, bh, Why, by):
    """Pure-JAX f32 reference matching the PyTorch semantics."""
    B, T, D = x.shape
    H = Wxh.shape[1]
    h = jnp.zeros((B, H), jnp.float32)
    for t in range(T):
        h = jnp.tanh(x[:, t, :] @ Wxh + h @ Whh + bh)
    return h @ Why + by


if __name__ == "__main__":
    # Module hyper-params (input_length, input_dim, hidden_dim, output_dim)
    seq_len, input_dim, hidden_dim, output_dim = 8, 4, 32, 10
    batch = 2

    key = jax.random.PRNGKey(0)
    k_x, k_wxh, k_whh, k_why = jax.random.split(key, 4)

    # Deterministic parameter init mirroring nn.Parameter(torch.randn(...) * 0.01)
    Wxh = jax.random.normal(k_wxh, (input_dim, hidden_dim), jnp.float32) * 0.01
    Whh = jax.random.normal(k_whh, (hidden_dim, hidden_dim), jnp.float32) * 0.01
    bh = jnp.zeros((hidden_dim,), jnp.float32)
    Why = jax.random.normal(k_why, (hidden_dim, output_dim), jnp.float32) * 0.01
    by = jnp.zeros((output_dim,), jnp.float32)  # `self.by` absent in __init__; zero bias

    x = jax.random.normal(k_x, (batch, seq_len, input_dim), jnp.float32)

    y = vanilla_rnn_forward(x, Wxh, Whh, bh, Why, by)
    y = jax.block_until_ready(y)

    y_ref = reference_rnn(x, Wxh, Whh, bh, Why, by)
    assert y.shape == (batch, output_dim)
    # bf16 matmul operands (per perf review) -> compare with loosened tolerance
    # against the f32 reference.
    assert jnp.allclose(y, y_ref, atol=5e-4, rtol=2e-2), "mismatch vs reference"

    print("KERNEL_OK")
</pallas_src>

<mosaic_0001>
module attributes {stable_mosaic.version = 11 : i64} {
  func.func @rnn_kernel(%arg0: i32, %arg1: memref<8x8x4xf32, #tpu.memory_space<vmem>>, %arg2: memref<36x32xbf16, #tpu.memory_space<vmem>>, %arg3: memref<1x32xf32, #tpu.memory_space<vmem>>, %arg4: memref<32x10xbf16, #tpu.memory_space<vmem>>, %arg5: memref<1x10xf32, #tpu.memory_space<vmem>>, %arg6: memref<8x10xf32, #tpu.memory_space<vmem>>) attributes {dimension_semantics = [#tpu.dimension_semantics<arbitrary>], iteration_bounds = array<i64: 1>, scalar_prefetch = 0 : i64, scratch_operands = 0 : i64, tpu.core_type = #tpu.core_type<tc>, window_params = [{pipeline_mode = #tpu.pipeline_mode<synchronous>, transform_indices = @transform_0, window_bounds = array<i64: 8, 8, 4>}, {pipeline_mode = #tpu.pipeline_mode<synchronous>, transform_indices = @transform_1, window_bounds = array<i64: 36, 32>}, {pipeline_mode = #tpu.pipeline_mode<synchronous>, transform_indices = @transform_2, window_bounds = array<i64: 1, 32>}, {pipeline_mode = #tpu.pipeline_mode<synchronous>, transform_indices = @transform_3, window_bounds = array<i64: 32, 10>}, {pipeline_mode = #tpu.pipeline_mode<synchronous>, transform_indices = @transform_4, window_bounds = array<i64: 1, 10>}, {pipeline_mode = #tpu.pipeline_mode<synchronous>, transform_indices = @transform_5, window_bounds = array<i64: 8, 10>}]} {
    %c0 = arith.constant 0 : index
    %c0_0 = arith.constant 0 : index
    %0 = vector.load %arg2[%c0, %c0_0] : memref<36x32xbf16, #tpu.memory_space<vmem>>, vector<36x32xbf16>
    %c0_1 = arith.constant 0 : index
    %c0_2 = arith.constant 0 : index
    %1 = vector.load %arg3[%c0_1, %c0_2] : memref<1x32xf32, #tpu.memory_space<vmem>>, vector<1x32xf32>
    %2 = vector.shape_cast %1 : vector<1x32xf32> to vector<1x32xf32>
    %3 = vector.broadcast %2 : vector<1x32xf32> to vector<8x32xf32>
    %c0_3 = arith.constant 0 : index
    %c0_4 = arith.constant 0 : index
    %4 = vector.load %arg5[%c0_3, %c0_4] : memref<1x10xf32, #tpu.memory_space<vmem>>, vector<1x10xf32>
    %5 = vector.shape_cast %4 : vector<1x10xf32> to vector<1x10xf32>
    %6 = vector.broadcast %5 : vector<1x10xf32> to vector<8x10xf32>
    %cst = arith.constant 0.000000e+00 : f32
    %7 = vector.broadcast %cst : f32 to vector<8x32xf32>
    %c0_5 = arith.constant 0 : index
    %c0_6 = arith.constant 0 : index
    %c0_7 = arith.constant 0 : index
    %8 = vector.load %arg1[%c0_5, %c0_6, %c0_7] : memref<8x8x4xf32, #tpu.memory_space<vmem>>, vector<8x1x4xf32>
    %9 = vector.shape_cast %8 : vector<8x1x4xf32> to vector<8x4xf32>
    %10 = tpu.concatenate %9, %7 in 1 : vector<8x4xf32>, vector<8x32xf32> -> vector<8x36xf32>
    %11 = arith.truncf %10 : vector<8x36xf32> to vector<8x36xbf16>
    %cst_8 = arith.constant dense<0.000000e+00> : vector<8x32xf32>
    %12 = tpu.matmul %11, %0, %cst_8 {dimension_numbers = #tpu.dot_dimension_numbers<[1], [0], [0], [1], [0, 0, 1, 1], [], []>} : vector<8x36xbf16>, vector<36x32xbf16>, vector<8x32xf32> -> vector<8x32xf32>
    %13 = arith.addf %12, %3 : vector<8x32xf32>
    %14 = math.tanh %13 : vector<8x32xf32>
    %c0_9 = arith.constant 0 : index
    %c1 = arith.constant 1 : index
    %c0_10 = arith.constant 0 : index
    %15 = vector.load %arg1[%c0_9, %c1, %c0_10] : memref<8x8x4xf32, #tpu.memory_space<vmem>>, vector<8x1x4xf32>
    %16 = vector.shape_cast %15 : vector<8x1x4xf32> to vector<8x4xf32>
    %17 = tpu.concatenate %16, %14 in 1 : vector<8x4xf32>, vector<8x32xf32> -> vector<8x36xf32>
    %18 = arith.truncf %17 : vector<8x36xf32> to vector<8x36xbf16>
    %cst_11 = arith.constant dense<0.000000e+00> : vector<8x32xf32>
    %19 = tpu.matmul %18, %0, %cst_11 {dimension_numbers = #tpu.dot_dimension_numbers<[1], [0], [0], [1], [0, 0, 1, 1], [], []>} : vector<8x36xbf16>, vector<36x32xbf16>, vector<8x32xf32> -> vector<8x32xf32>
    %20 = arith.addf %19, %3 : vector<8x32xf32>
    %21 = math.tanh %20 : vector<8x32xf32>
    %c0_12 = arith.constant 0 : index
    %c2 = arith.constant 2 : index
    %c0_13 = arith.constant 0 : index
    %22 = vector.load %arg1[%c0_12, %c2, %c0_13] : memref<8x8x4xf32, #tpu.memory_space<vmem>>, vector<8x1x4xf32>
    %23 = vector.shape_cast %22 : vector<8x1x4xf32> to vector<8x4xf32>
    %24 = tpu.concatenate %23, %21 in 1 : vector<8x4xf32>, vector<8x32xf32> -> vector<8x36xf32>
    %25 = arith.truncf %24 : vector<8x36xf32> to vector<8x36xbf16>
    %cst_14 = arith.constant dense<0.000000e+00> : vector<8x32xf32>
    %26 = tpu.matmul %25, %0, %cst_14 {dimension_numbers = #tpu.dot_dimension_numbers<[1], [0], [0], [1], [0, 0, 1, 1], [], []>} : vector<8x36xbf16>, vector<36x32xbf16>, vector<8x32xf32> -> vector<8x32xf32>
    %27 = arith.addf %26, %3 : vector<8x32xf32>
    %28 = math.tanh %27 : vector<8x32xf32>
    %c0_15 = arith.constant 0 : index
    %c3 = arith.constant 3 : index
    %c0_16 = arith.constant 0 : index
    %29 = vector.load %arg1[%c0_15, %c3, %c0_16] : memref<8x8x4xf32, #tpu.memory_space<vmem>>, vector<8x1x4xf32>
    %30 = vector.shape_cast %29 : vector<8x1x4xf32> to vector<8x4xf32>
    %31 = tpu.concatenate %30, %28 in 1 : vector<8x4xf32>, vector<8x32xf32> -> vector<8x36xf32>
    %32 = arith.truncf %31 : vector<8x36xf32> to vector<8x36xbf16>
    %cst_17 = arith.constant dense<0.000000e+00> : vector<8x32xf32>
    %33 = tpu.matmul %32, %0, %cst_17 {dimension_numbers = #tpu.dot_dimension_numbers<[1], [0], [0], [1], [0, 0, 1, 1], [], []>} : vector<8x36xbf16>, vector<36x32xbf16>, vector<8x32xf32> -> vector<8x32xf32>
    %34 = arith.addf %33, %3 : vector<8x32xf32>
    %35 = math.tanh %34 : vector<8x32xf32>
    %c0_18 = arith.constant 0 : index
    %c4 = arith.constant 4 : index
    %c0_19 = arith.constant 0 : index
    %36 = vector.load %arg1[%c0_18, %c4, %c0_19] : memref<8x8x4xf32, #tpu.memory_space<vmem>>, vector<8x1x4xf32>
    %37 = vector.shape_cast %36 : vector<8x1x4xf32> to vector<8x4xf32>
    %38 = tpu.concatenate %37, %35 in 1 : vector<8x4xf32>, vector<8x32xf32> -> vector<8x36xf32>
    %39 = arith.truncf %38 : vector<8x36xf32> to vector<8x36xbf16>
    %cst_20 = arith.constant dense<0.000000e+00> : vector<8x32xf32>
    %40 = tpu.matmul %39, %0, %cst_20 {dimension_numbers = #tpu.dot_dimension_numbers<[1], [0], [0], [1], [0, 0, 1, 1], [], []>} : vector<8x36xbf16>, vector<36x32xbf16>, vector<8x32xf32> -> vector<8x32xf32>
    %41 = arith.addf %40, %3 : vector<8x32xf32>
    %42 = math.tanh %41 : vector<8x32xf32>
    %c0_21 = arith.constant 0 : index
    %c5 = arith.constant 5 : index
    %c0_22 = arith.constant 0 : index
    %43 = vector.load %arg1[%c0_21, %c5, %c0_22] : memref<8x8x4xf32, #tpu.memory_space<vmem>>, vector<8x1x4xf32>
    %44 = vector.shape_cast %43 : vector<8x1x4xf32> to vector<8x4xf32>
    %45 = tpu.concatenate %44, %42 in 1 : vector<8x4xf32>, vector<8x32xf32> -> vector<8x36xf32>
    %46 = arith.truncf %45 : vector<8x36xf32> to vector<8x36xbf16>
    %cst_23 = arith.constant dense<0.000000e+00> : vector<8x32xf32>
    %47 = tpu.matmul %46, %0, %cst_23 {dimension_numbers = #tpu.dot_dimension_numbers<[1], [0], [0], [1], [0, 0, 1, 1], [], []>} : vector<8x36xbf16>, vector<36x32xbf16>, vector<8x32xf32> -> vector<8x32xf32>
    %48 = arith.addf %47, %3 : vector<8x32xf32>
    %49 = math.tanh %48 : vector<8x32xf32>
    %c0_24 = arith.constant 0 : index
    %c6 = arith.constant 6 : index
    %c0_25 = arith.constant 0 : index
    %50 = vector.load %arg1[%c0_24, %c6, %c0_25] : memref<8x8x4xf32, #tpu.memory_space<vmem>>, vector<8x1x4xf32>
    %51 = vector.shape_cast %50 : vector<8x1x4xf32> to vector<8x4xf32>
    %52 = tpu.concatenate %51, %49 in 1 : vector<8x4xf32>, vector<8x32xf32> -> vector<8x36xf32>
    %53 = arith.truncf %52 : vector<8x36xf32> to vector<8x36xbf16>
    %cst_26 = arith.constant dense<0.000000e+00> : vector<8x32xf32>
    %54 = tpu.matmul %53, %0, %cst_26 {dimension_numbers = #tpu.dot_dimension_numbers<[1], [0], [0], [1], [0, 0, 1, 1], [], []>} : vector<8x36xbf16>, vector<36x32xbf16>, vector<8x32xf32> -> vector<8x32xf32>
    %55 = arith.addf %54, %3 : vector<8x32xf32>
    %56 = math.tanh %55 : vector<8x32xf32>
    %c0_27 = arith.constant 0 : index
    %c7 = arith.constant 7 : index
    %c0_28 = arith.constant 0 : index
    %57 = vector.load %arg1[%c0_27, %c7, %c0_28] : memref<8x8x4xf32, #tpu.memory_space<vmem>>, vector<8x1x4xf32>
    %58 = vector.shape_cast %57 : vector<8x1x4xf32> to vector<8x4xf32>
    %59 = tpu.concatenate %58, %56 in 1 : vector<8x4xf32>, vector<8x32xf32> -> vector<8x36xf32>
    %60 = arith.truncf %59 : vector<8x36xf32> to vector<8x36xbf16>
    %cst_29 = arith.constant dense<0.000000e+00> : vector<8x32xf32>
    %61 = tpu.matmul %60, %0, %cst_29 {dimension_numbers = #tpu.dot_dimension_numbers<[1], [0], [0], [1], [0, 0, 1, 1], [], []>} : vector<8x36xbf16>, vector<36x32xbf16>, vector<8x32xf32> -> vector<8x32xf32>
    %62 = arith.addf %61, %3 : vector<8x32xf32>
    %63 = math.tanh %62 : vector<8x32xf32>
    %64 = arith.truncf %63 : vector<8x32xf32> to vector<8x32xbf16>
    %c0_30 = arith.constant 0 : index
    %c0_31 = arith.constant 0 : index
    %65 = vector.load %arg4[%c0_30, %c0_31] : memref<32x10xbf16, #tpu.memory_space<vmem>>, vector<32x10xbf16>
    %cst_32 = arith.constant dense<0.000000e+00> : vector<8x10xf32>
    %66 = tpu.matmul %64, %65, %cst_32 {dimension_numbers = #tpu.dot_dimension_numbers<[1], [0], [0], [1], [0, 0, 1, 1], [], []>} : vector<8x32xbf16>, vector<32x10xbf16>, vector<8x10xf32> -> vector<8x10xf32>
    %67 = arith.addf %66, %6 : vector<8x10xf32>
    %c0_33 = arith.constant 0 : index
    %c0_34 = arith.constant 0 : index
    %68 = vector.load %arg6[%c0_33, %c0_34] : memref<8x10xf32, #tpu.memory_space<vmem>>, vector<8x10xf32>
    tpu.vector_store %arg6[%c0_33, %c0_34], %67 {strides = array<i32>} : memref<8x10xf32, #tpu.memory_space<vmem>>, vector<8x10xf32>,
    return
  }
  func.func @transform_0(%arg0: i32) -> (i32, i32, i32) {
    %c0_i32 = arith.constant 0 : i32
    %c0_i32_0 = arith.constant 0 : i32
    %c0_i32_1 = arith.constant 0 : i32
    %c0_i32_2 = arith.constant 0 : i32
    return %c0_i32, %c0_i32_0, %c0_i32_1 : i32, i32, i32
  }
  func.func @transform_1(%arg0: i32) -> (i32, i32) {
    %c0_i32 = arith.constant 0 : i32
    %c0_i32_0 = arith.constant 0 : i32
    %c0_i32_1 = arith.constant 0 : i32
    return %c0_i32, %c0_i32_0 : i32, i32
  }
  func.func @transform_2(%arg0: i32) -> (i32, i32) {
    %c0_i32 = arith.constant 0 : i32
    %c0_i32_0 = arith.constant 0 : i32
    %c0_i32_1 = arith.constant 0 : i32
    return %c0_i32, %c0_i32_0 : i32, i32
  }
  func.func @transform_3(%arg0: i32) -> (i32, i32) {
    %c0_i32 = arith.constant 0 : i32
    %c0_i32_0 = arith.constant 0 : i32
    %c0_i32_1 = arith.constant 0 : i32
    return %c0_i32, %c0_i32_0 : i32, i32
  }
  func.func @transform_4(%arg0: i32) -> (i32, i32) {
    %c0_i32 = arith.constant 0 : i32
    %c0_i32_0 = arith.constant 0 : i32
    %c0_i32_1 = arith.constant 0 : i32
    return %c0_i32, %c0_i32_0 : i32, i32
  }
  func.func @transform_5(%arg0: i32) -> (i32, i32) {
    %c0_i32 = arith.constant 0 : i32
    %c0_i32_0 = arith.constant 0 : i32
    %c0_i32_1 = arith.constant 0 : i32
    return %c0_i32, %c0_i32_0 : i32, i32
  }
}

</mosaic_0001>

<llo_original>
// kernel: vanilla_rnn_forward.1
$region0: #{vanilla_rnn_forward.1}
  #allocation0 [shape = 'u32[]', space=smem, size = 0x4, offset = 0x4, fixed_abs, tag = 'smem constant byte address 0x4 - core index']
  #allocation1 [shape = 'u32[72,128]{1,0:T(1,128)}', space=vmem, size = 0x9000, scoped, tag = 'internal scratch']
  %s0 = inlined_call_operand.vmem [shape: f32[8,8,4], index: 0, kind: input, shape index: {}]
  %s1 = inlined_call_operand.vmem [shape: bf16[36,32], index: 1, kind: input, shape index: {}]
  %s2 = inlined_call_operand.vmem [shape: f32[1,32], index: 2, kind: input, shape index: {}]
  %s3 = inlined_call_operand.vmem [shape: bf16[32,10], index: 3, kind: input, shape index: {}]
  %s4 = inlined_call_operand.vmem [shape: f32[1,10], index: 4, kind: input, shape index: {}]
  %s5 = inlined_call_operand.vmem [shape: f32[8,10], index: 5, kind: output, shape index: {}]
  %s6 = sld [smem:[#allocation0]]
  $region30: #{vanilla_rnn_forward.1} parent=0
    _
  %s8 = ssub.s32 1, %s6
  %s9 = scalar_select 0, %s8, %s6
  // Predicated region
  $region2: #{vanilla_rnn_forward.1} parent=0 // pred_check
    _
  $region3: #{vanilla_rnn_forward.1} parent=0 // pred_check_branch
    %11 = sbr.rel (0) target = $region5
  $region4: #{vanilla_rnn_forward.1} parent=0 // pred_region
    _
  $region5: #{vanilla_rnn_forward.1} parent=0 // pred_fallthru
    _
  // Predicated region
  $region6: #{vanilla_rnn_forward.1} parent=0 // pred_check
    _
  $region7: #{vanilla_rnn_forward.1} parent=0 // pred_check_branch
    %13 = sbr.rel (0) target = $region9
  $region8: #{vanilla_rnn_forward.1} parent=0 // pred_region
    _
  $region9: #{vanilla_rnn_forward.1} parent=0 // pred_fallthru
    _
  // Predicated region
  $region10: #{vanilla_rnn_forward.1} parent=0 // pred_check
    _
  $region11: #{vanilla_rnn_forward.1} parent=0 // pred_check_branch
    %15 = sbr.rel (0) target = $region13
  $region12: #{vanilla_rnn_forward.1} parent=0 // pred_region
    _
  $region13: #{vanilla_rnn_forward.1} parent=0 // pred_fallthru
    _
  // Predicated region
  $region14: #{vanilla_rnn_forward.1} parent=0 // pred_check
    _
  $region15: #{vanilla_rnn_forward.1} parent=0 // pred_check_branch
    %17 = sbr.rel (0) target = $region17
  $region16: #{vanilla_rnn_forward.1} parent=0 // pred_region
    _
  $region17: #{vanilla_rnn_forward.1} parent=0 // pred_fallthru
    _
  // Predicated region
  $region18: #{vanilla_rnn_forward.1} parent=0 // pred_check
    _
  $region19: #{vanilla_rnn_forward.1} parent=0 // pred_check_branch
    %19 = sbr.rel (0) target = $region21
  $region20: #{vanilla_rnn_forward.1} parent=0 // pred_region
    _
  $region21: #{vanilla_rnn_forward.1} parent=0 // pred_fallthru
    _
  %v21 = vld [vmem:[%s1] sm:$0xf]
  %v22 = vld [vmem:[%s1 + $0x4] sm:$0xf]
  %v23 = vld [vmem:[%s1 + $0x8] sm:$0xf]
  %v24 = vld [vmem:[%s1 + $0xc] sm:$0xf]
  %v25 = vld [vmem:[%s1 + $0x10] sm:$0x3]
  %v26 = vld [vmem:[%s2] sm:$0x1]
  %v28 = vperm.slane %v26, 0
  %v30 = vld [vmem:[%s4] sm:$0x1]
  %v32 = vperm.slane %v30, 0
  %v34 = vld [vmem:[%s0] sm:$0x1]
  %v35 = vld [vmem:[%s0 + $0x8] sm:$0x1]
  %v36 = vld [vmem:[%s0 + $0x10] sm:$0x1]
  %v37 = vld [vmem:[%s0 + $0x18] sm:$0x1]
  %v38 = vld [vmem:[%s0 + $0x20] sm:$0x1]
  %v39 = vld [vmem:[%s0 + $0x28] sm:$0x1]
  %v40 = vld [vmem:[%s0 + $0x30] sm:$0x1]
  %v41 = vld [vmem:[%s0 + $0x38] sm:$0x1]
  %v50 = vrot.slane %v35, 7
  %vm51 = vcmask 1041409
  %v52 = vsel %vm51, %v50, %v34
  %v53 = vrot.slane %v36, 6
  %vm54 = vcmask 1042434
  %v55 = vsel %vm54, %v53, %v52
  %v56 = vrot.slane %v37, 5
  %vm57 = vcmask 1043459
  %v58 = vsel %vm57, %v56, %v55
  %v59 = vrot.slane %v38, 4
  %vm60 = vcmask 1044484
  %v61 = vsel %vm60, %v59, %v58
  %v62 = vrot.slane %v39, 3
  %vm63 = vcmask 1045509
  %v64 = vsel %vm63, %v62, %v61
  %v65 = vrot.slane %v40, 2
  %vm66 = vcmask 1046534
  %v67 = vsel %vm66, %v65, %v64
  %v68 = vrot.slane %v41, 1
  %vm69 = vcmask 1047559
  %v70 = vsel %vm69, %v68, %v67
  %vm72 = vcmask 31744
  %v73 = vsel %vm72, %v70, 0.0
  %v74 = vpack.c.bf16 %v73, %v73
  %v80 = vunpack.c.l.b16 %v21
  %v81 = vunpack.c.l.b16 %v22
  %v82 = vunpack.c.l.b16 %v23
  %v83 = vunpack.c.l.b16 %v24
  %v84 = vunpack.c.l.b16 %v25
  %v85 = vpack.c.b16 %v81, %v80
  %v86 = vpack.c.b16 %v83, %v82
  %v87 = vpack.c.b16 %v84, %v84
  %vm90 = vcmask 293888
  %v92 = vsel %vm90, %v74, 0
  %vm94 = vcmask 1041408
  %v96 = vsel %vm94, %v87, 0
  %98 = vmatpush.bf16.msra.mxu0 0
  %99 = vmatpush.bf16.msra.mxu0 0
  %100 = vmatpush.bf16.msra.mxu0 0
  %101 = vmatpush.bf16.msra.mxu0 0
  %102 = vmatpush.bf16.msra.mxu0 0
  %103 = vmatpush.bf16.msra.mxu0 %v96
  %104 = vmatpush.bf16.msra.mxu0 %v86
  %105 = vmatpush.bf16.msra.mxu0 %v85
  %106 = vmatmul.bf16.gmra.mxu0 %v92
  %v107 = vpop.f32.mrf.mxu0
  %v108 = vadd.f32 %v28, %v107
  %v109 = vpop.f32.mrf.mxu0
  %110 = vdwg.mxu0
  %v111 = vtanh.pop %v108
  %v112 = vld [vmem:[%s0 + $0x1] sm:$0x1]
  %v113 = vld [vmem:[%s0 + $0x9] sm:$0x1]
  %v114 = vld [vmem:[%s0 + $0x11] sm:$0x1]
  %v115 = vld [vmem:[%s0 + $0x19] sm:$0x1]
  %v116 = vld [vmem:[%s0 + $0x21] sm:$0x1]
  %v117 = vld [vmem:[%s0 + $0x29] sm:$0x1]
  %v118 = vld [vmem:[%s0 + $0x31] sm:$0x1]
  %v119 = vld [vmem:[%s0 + $0x39] sm:$0x1]
  %v128 = vrot.slane %v113, 7
  %v129 = vsel %vm51, %v128, %v112
  %v130 = vrot.slane %v114, 6
  %v131 = vsel %vm54, %v130, %v129
  %v132 = vrot.slane %v115, 5
  %v133 = vsel %vm57, %v132, %v131
  %v134 = vrot.slane %v116, 4
  %v135 = vsel %vm60, %v134, %v133
  %v136 = vrot.slane %v117, 3
  %v137 = vsel %vm63, %v136, %v135
  %v138 = vrot.slane %v118, 2
  %v139 = vsel %vm66, %v138, %v137
  %v140 = vrot.slane %v119, 1
  %v141 = vsel %vm69, %v140, %v139
  %144 = vrot.lane.b32.xlu0 %v111, 4
  %v145 = vpop.permute.xlu0 %144
  %v147 = vsel %vm72, %v141, %v145
  %v148 = vpack.c.bf16 %v147, %v147
  %v150 = vsel %vm90, %v148, 0
  %152 = vmatpush.bf16.msra.mxu0 0
  %153 = vmatpush.bf16.msra.mxu0 0
  %154 = vmatpush.bf16.msra.mxu0 0
  %155 = vmatpush.bf16.msra.mxu0 0
  %156 = vmatpush.bf16.msra.mxu0 0
  %157 = vmatpush.bf16.msra.mxu0 %v96
  %158 = vmatpush.bf16.msra.mxu0 %v86
  %159 = vmatpush.bf16.msra.mxu0 %v85
  %160 = vmatmul.bf16.gmra.mxu0 %v150
  %v161 = vpop.f32.mrf.mxu0
  %v162 = vadd.f32 %v28, %v161
  %v163 = vpop.f32.mrf.mxu0
  %164 = vdwg.mxu0
  %v165 = vtanh.pop %v162
  %v166 = vld [vmem:[%s0 + $0x2] sm:$0x1]
  %v167 = vld [vmem:[%s0 + $0xa] sm:$0x1]
  %v168 = vld [vmem:[%s0 + $0x12] sm:$0x1]
  %v169 = vld [vmem:[%s0 + $0x1a] sm:$0x1]
  %v170 = vld [vmem:[%s0 + $0x22] sm:$0x1]
  %v171 = vld [vmem:[%s0 + $0x2a] sm:$0x1]
  %v172 = vld [vmem:[%s0 + $0x32] sm:$0x1]
  %v173 = vld [vmem:[%s0 + $0x3a] sm:$0x1]
  %v182 = vrot.slane %v167, 7
  %v183 = vsel %vm51, %v182, %v166
  %v184 = vrot.slane %v168, 6
  %v185 = vsel %vm54, %v184, %v183
  %v186 = vrot.slane %v169, 5
  %v187 = vsel %vm57, %v186, %v185
  %v188 = vrot.slane %v170, 4
  %v189 = vsel %vm60, %v188, %v187
  %v190 = vrot.slane %v171, 3
  %v191 = vsel %vm63, %v190, %v189
  %v192 = vrot.slane %v172, 2
  %v193 = vsel %vm66, %v192, %v191
  %v194 = vrot.slane %v173, 1
  %v195 = vsel %vm69, %v194, %v193
  %198 = vrot.lane.b32.xlu0 %v165, 4
  %v199 = vpop.permute.xlu0 %198
  %v201 = vsel %vm72, %v195, %v199
  %v202 = vpack.c.bf16 %v201, %v201
  %v204 = vsel %vm90, %v202, 0
  %206 = vmatpush.bf16.msra.mxu0 0
  %207 = vmatpush.bf16.msra.mxu0 0
  %208 = vmatpush.bf16.msra.mxu0 0
  %209 = vmatpush.bf16.msra.mxu0 0
  %210 = vmatpush.bf16.msra.mxu0 0
  %211 = vmatpush.bf16.msra.mxu0 %v96
  %212 = vmatpush.bf16.msra.mxu0 %v86
  %213 = vmatpush.bf16.msra.mxu0 %v85
  %214 = vmatmul.bf16.gmra.mxu0 %v204
  %v215 = vpop.f32.mrf.mxu0
  %v216 = vadd.f32 %v28, %v215
  %v217 = vpop.f32.mrf.mxu0
  %218 = vdwg.mxu0
  %v219 = vtanh.pop %v216
  %v220 = vld [vmem:[%s0 + $0x3] sm:$0x1]
  %v221 = vld [vmem:[%s0 + $0xb] sm:$0x1]
  %v222 = vld [vmem:[%s0 + $0x13] sm:$0x1]
  %v223 = vld [vmem:[%s0 + $0x1b] sm:$0x1]
  %v224 = vld [vmem:[%s0 + $0x23] sm:$0x1]
  %v225 = vld [vmem:[%s0 + $0x2b] sm:$0x1]
  %v226 = vld [vmem:[%s0 + $0x33] sm:$0x1]
  %v227 = vld [vmem:[%s0 + $0x3b] sm:$0x1]
  %v236 = vrot.slane %v221, 7
  %v237 = vsel %vm51, %v236, %v220
  %v238 = vrot.slane %v222, 6
  %v239 = vsel %vm54, %v238, %v237
  %v240 = vrot.slane %v223, 5
  %v241 = vsel %vm57, %v240, %v239
  %v242 = vrot.slane %v224, 4
  %v243 = vsel %vm60, %v242, %v241
  %v244 = vrot.slane %v225, 3
  %v245 = vsel %vm63, %v244, %v243
  %v246 = vrot.slane %v226, 2
  %v247 = vsel %vm66, %v246, %v245
  %v248 = vrot.slane %v227, 1
  %v249 = vsel %vm69, %v248, %v247
  %252 = vrot.lane.b32.xlu0 %v219, 4
  %v253 = vpop.permute.xlu0 %252
  %v255 = vsel %vm72, %v249, %v253
  %v256 = vpack.c.bf16 %v255, %v255
  %v258 = vsel %vm90, %v256, 0
  %260 = vmatpush.bf16.msra.mxu0 0
  %261 = vmatpush.bf16.msra.mxu0 0
  %262 = vmatpush.bf16.msra.mxu0 0
  %263 = vmatpush.bf16.msra.mxu0 0
  %264 = vmatpush.bf16.msra.mxu0 0
  %265 = vmatpush.bf16.msra.mxu0 %v96
  %266 = vmatpush.bf16.msra.mxu0 %v86
  %267 = vmatpush.bf16.msra.mxu0 %v85
  %268 = vmatmul.bf16.gmra.mxu0 %v258
  %v269 = vpop.f32.mrf.mxu0
  %v270 = vadd.f32 %v28, %v269
  %v271 = vpop.f32.mrf.mxu0
  %272 = vdwg.mxu0
  %v273 = vtanh.pop %v270
  %v274 = vld [vmem:[%s0 + $0x4] sm:$0x1]
  %v275 = vld [vmem:[%s0 + $0xc] sm:$0x1]
  %v276 = vld [vmem:[%s0 + $0x14] sm:$0x1]
  %v277 = vld [vmem:[%s0 + $0x1c] sm:$0x1]
  %v278 = vld [vmem:[%s0 + $0x24] sm:$0x1]
  %v279 = vld [vmem:[%s0 + $0x2c] sm:$0x1]
  %v280 = vld [vmem:[%s0 + $0x34] sm:$0x1]
  %v281 = vld [vmem:[%s0 + $0x3c] sm:$0x1]
  %v290 = vrot.slane %v275, 7
  %v291 = vsel %vm51, %v290, %v274
  %v292 = vrot.slane %v276, 6
  %v293 = vsel %vm54, %v292, %v291
  %v294 = vrot.slane %v277, 5
  %v295 = vsel %vm57, %v294, %v293
  %v296 = vrot.slane %v278, 4
  %v297 = vsel %vm60, %v296, %v295
  %v298 = vrot.slane %v279, 3
  %v299 = vsel %vm63, %v298, %v297
  %v300 = vrot.slane %v280, 2
  %v301 = vsel %vm66, %v300, %v299
  %v302 = vrot.slane %v281, 1
  %v303 = vsel %vm69, %v302, %v301
  %306 = vrot.lane.b32.xlu0 %v273, 4
  %v307 = vpop.permute.xlu0 %306
  %v309 = vsel %vm72, %v303, %v307
  %v310 = vpack.c.bf16 %v309, %v309
  %v312 = vsel %vm90, %v310, 0
  %314 = vmatpush.bf16.msra.mxu0 0
  %315 = vmatpush.bf16.msra.mxu0 0
  %316 = vmatpush.bf16.msra.mxu0 0
  %317 = vmatpush.bf16.msra.mxu0 0
  %318 = vmatpush.bf16.msra.mxu0 0
  %319 = vmatpush.bf16.msra.mxu0 %v96
  %320 = vmatpush.bf16.msra.mxu0 %v86
  %321 = vmatpush.bf16.msra.mxu0 %v85
  %322 = vmatmul.bf16.gmra.mxu0 %v312
  %v323 = vpop.f32.mrf.mxu0
  %v324 = vadd.f32 %v28, %v323
  %v325 = vpop.f32.mrf.mxu0
  %326 = vdwg.mxu0
  %v327 = vtanh.pop %v324
  %v328 = vld [vmem:[%s0 + $0x5] sm:$0x1]
  %v329 = vld [vmem:[%s0 + $0xd] sm:$0x1]
  %v330 = vld [vmem:[%s0 + $0x15] sm:$0x1]
  %v331 = vld [vmem:[%s0 + $0x1d] sm:$0x1]
  %v332 = vld [vmem:[%s0 + $0x25] sm:$0x1]
  %v333 = vld [vmem:[%s0 + $0x2d] sm:$0x1]
  %v334 = vld [vmem:[%s0 + $0x35] sm:$0x1]
  %v335 = vld [vmem:[%s0 + $0x3d] sm:$0x1]
  %v344 = vrot.slane %v329, 7
  %v345 = vsel %vm51, %v344, %v328
  %v346 = vrot.slane %v330, 6
  %v347 = vsel %vm54, %v346, %v345
  %v348 = vrot.slane %v331, 5
  %v349 = vsel %vm57, %v348, %v347
  %v350 = vrot.slane %v332, 4
  %v351 = vsel %vm60, %v350, %v349
  %v352 = vrot.slane %v333, 3
  %v353 = vsel %vm63, %v352, %v351
  %v354 = vrot.slane %v334, 2
  %v355 = vsel %vm66, %v354, %v353
  %v356 = vrot.slane %v335, 1
  %v357 = vsel %vm69, %v356, %v355
  %360 = vrot.lane.b32.xlu0 %v327, 4
  %v361 = vpop.permute.xlu0 %360
  %v363 = vsel %vm72, %v357, %v361
  %v364 = vpack.c.bf16 %v363, %v363
  %v366 = vsel %vm90, %v364, 0
  %368 = vmatpush.bf16.msra.mxu0 0
  %369 = vmatpush.bf16.msra.mxu0 0
  %370 = vmatpush.bf16.msra.mxu0 0
  %371 = vmatpush.bf16.msra.mxu0 0
  %372 = vmatpush.bf16.msra.mxu0 0
  %373 = vmatpush.bf16.msra.mxu0 %v96
  %374 = vmatpush.bf16.msra.mxu0 %v86
  %375 = vmatpush.bf16.msra.mxu0 %v85
  %376 = vmatmul.bf16.gmra.mxu0 %v366
  %v377 = vpop.f32.mrf.mxu0
  %v378 = vadd.f32 %v28, %v377
  %v379 = vpop.f32.mrf.mxu0
  %380 = vdwg.mxu0
  %v381 = vtanh.pop %v378
  %v382 = vld [vmem:[%s0 + $0x6] sm:$0x1]
  %v383 = vld [vmem:[%s0 + $0xe] sm:$0x1]
  %v384 = vld [vmem:[%s0 + $0x16] sm:$0x1]
  %v385 = vld [vmem:[%s0 + $0x1e] sm:$0x1]
  %v386 = vld [vmem:[%s0 + $0x26] sm:$0x1]
  %v387 = vld [vmem:[%s0 + $0x2e] sm:$0x1]
  %v388 = vld [vmem:[%s0 + $0x36] sm:$0x1]
  %v389 = vld [vmem:[%s0 + $0x3e] sm:$0x1]
  %v398 = vrot.slane %v383, 7
  %v399 = vsel %vm51, %v398, %v382
  %v400 = vrot.slane %v384, 6
  %v401 = vsel %vm54, %v400, %v399
  %v402 = vrot.slane %v385, 5
  %v403 = vsel %vm57, %v402, %v401
  %v404 = vrot.slane %v386, 4
  %v405 = vsel %vm60, %v404, %v403
  %v406 = vrot.slane %v387, 3
  %v407 = vsel %vm63, %v406, %v405
  %v408 = vrot.slane %v388, 2
  %v409 = vsel %vm66, %v408, %v407
  %v410 = vrot.slane %v389, 1
  %v411 = vsel %vm69, %v410, %v409
  %414 = vrot.lane.b32.xlu0 %v381, 4
  %v415 = vpop.permute.xlu0 %414
  %v417 = vsel %vm72, %v411, %v415
  %v418 = vpack.c.bf16 %v417, %v417
  %v420 = vsel %vm90, %v418, 0
  %422 = vmatpush.bf16.msra.mxu0 0
  %423 = vmatpush.bf16.msra.mxu0 0
  %424 = vmatpush.bf16.msra.mxu0 0
  %425 = vmatpush.bf16.msra.mxu0 0
  %426 = vmatpush.bf16.msra.mxu0 0
  %427 = vmatpush.bf16.msra.mxu0 %v96
  %428 = vmatpush.bf16.msra.mxu0 %v86
  %429 = vmatpush.bf16.msra.mxu0 %v85
  %430 = vmatmul.bf16.gmra.mxu0 %v420
  %v431 = vpop.f32.mrf.mxu0
  %v432 = vadd.f32 %v28, %v431
  %v433 = vpop.f32.mrf.mxu0
  %434 = vdwg.mxu0
  %v435 = vtanh.pop %v432
  %v436 = vld [vmem:[%s0 + $0x7] sm:$0x1]
  %v437 = vld [vmem:[%s0 + $0xf] sm:$0x1]
  %v438 = vld [vmem:[%s0 + $0x17] sm:$0x1]
  %v439 = vld [vmem:[%s0 + $0x1f] sm:$0x1]
  %v440 = vld [vmem:[%s0 + $0x27] sm:$0x1]
  %v441 = vld [vmem:[%s0 + $0x2f] sm:$0x1]
  %v442 = vld [vmem:[%s0 + $0x37] sm:$0x1]
  %v443 = vld [vmem:[%s0 + $0x3f] sm:$0x1]
  %v452 = vrot.slane %v437, 7
  %v453 = vsel %vm51, %v452, %v436
  %v454 = vrot.slane %v438, 6
  %v455 = vsel %vm54, %v454, %v453
  %v456 = vrot.slane %v439, 5
  %v457 = vsel %vm57, %v456, %v455
  %v458 = vrot.slane %v440, 4
  %v459 = vsel %vm60, %v458, %v457
  %v460 = vrot.slane %v441, 3
  %v461 = vsel %vm63, %v460, %v459
  %v462 = vrot.slane %v442, 2
  %v463 = vsel %vm66, %v462, %v461
  %v464 = vrot.slane %v443, 1
  %v465 = vsel %vm69, %v464, %v463
  %468 = vrot.lane.b32.xlu0 %v435, 4
  %v469 = vpop.permute.xlu0 %468
  %v471 = vsel %vm72, %v465, %v469
  %v472 = vpack.c.bf16 %v471, %v471
  %v474 = vsel %vm90, %v472, 0
  %476 = vmatpush.bf16.msra.mxu0 0
  %477 = vmatpush.bf16.msra.mxu0 0
  %478 = vmatpush.bf16.msra.mxu0 0
  %479 = vmatpush.bf16.msra.mxu0 0
  %480 = vmatpush.bf16.msra.mxu0 0
  %481 = vmatpush.bf16.msra.mxu0 %v96
  %482 = vmatpush.bf16.msra.mxu0 %v86
  %483 = vmatpush.bf16.msra.mxu0 %v85
  %484 = vmatmul.bf16.gmra.mxu0 %v474
  %v485 = vpop.f32.mrf.mxu0
  %v486 = vadd.f32 %v28, %v485
  %v487 = vpop.f32.mrf.mxu0
  %488 = vdwg.mxu0
  %v489 = vtanh.pop %v486
  %v490 = vpack.c.bf16 %v489, %v489
  %v491 = vld [vmem:[%s3] sm:$0xf]
  %v492 = vld [vmem:[%s3 + $0x4] sm:$0xf]
  %v493 = vld [vmem:[%s3 + $0x8] sm:$0xf]
  %v494 = vld [vmem:[%s3 + $0xc] sm:$0xf]
  %v499 = vunpack.c.l.b16 %v491
  %v500 = vunpack.c.l.b16 %v492
  %v501 = vunpack.c.l.b16 %v493
  %v502 = vunpack.c.l.b16 %v494
  %v503 = vpack.c.b16 %v500, %v499
  %v504 = vpack.c.b16 %v502, %v501
  %vm507 = vcmask 261120
  %v509 = vsel %vm507, %v490, 0
  %511 = vmatpush.bf16.msra.mxu0 0
  %512 = vmatpush.bf16.msra.mxu0 0
  %513 = vmatpush.bf16.msra.mxu0 0
  %514 = vmatpush.bf16.msra.mxu0 0
  %515 = vmatpush.bf16.msra.mxu0 0
  %516 = vmatpush.bf16.msra.mxu0 0
  %517 = vmatpush.bf16.msra.mxu0 %v504
  %518 = vmatpush.bf16.msra.mxu0 %v503
  %519 = vmatmul.bf16.gmra.mxu0 %v509
  %v520 = vpop.f32.mrf.mxu0
  %v521 = vadd.f32 %v32, %v520
  %v522 = vpop.f32.mrf.mxu0
  %523 = vdwg.mxu0
  %vm524 = vcmask 80896
  %525 = vst.msk [vmem:[%s5] sm:$0xff] %vm524, %v521
  // Predicated region
  $region22: #{vanilla_rnn_forward.1} parent=0 // pred_check
    _
  $region23: #{vanilla_rnn_forward.1} parent=0 // pred_check_branch
    %527 = sbr.rel (0) target = $region25
  $region24: #{vanilla_rnn_forward.1} parent=0 // pred_region
    _
  $region25: #{vanilla_rnn_forward.1} parent=0 // pred_fallthru
    _
  // Predicated region
  $region26: #{vanilla_rnn_forward.1} parent=0 // pred_check
    _
  $region27: #{vanilla_rnn_forward.1} parent=0 // pred_check_branch
    %529 = sbr.rel (0) target = $region29
  $region28: #{vanilla_rnn_forward.1} parent=0 // pred_region
    _
  $region29: #{vanilla_rnn_forward.1} parent=0 // pred_fallthru
    _

</llo_original>
